<compile_context>
chip_gen: v7x
topology: tpu7x:2x2x1
jax: 0.10.0
libtpu: 0.0.40
codegen_flags: <defaults>
</compile_context>

<pallas_src>
import jax
import jax.numpy as jnp
from jax.experimental import pallas as pl
from jax.experimental.pallas import tpu as pltpu


def value_network_kernel(x_ref, w1_ref, b1_ref, w2_ref, b2_ref, w3_ref, b3_ref, o_ref):
    # x: [tb, D] f32 ; w1: [D, 64] bf16 ; b1: [1, 64] f32 ; w2: [64, 32] bf16 ; b2: [1, 32] f32
    # w3: [32, 1] f32 ; b3: (1, 1) f32 in SMEM ; o: [1, tb] f32
    x = x_ref[...].astype(jnp.bfloat16)            # cast in-kernel: no extra HBM pass for obv

    # Layer 1 (+ folded sigmoid): bf16 MXU operands, f32 accumulation, tanh on the EUP.
    t1 = jnp.tanh(jnp.dot(x, w1_ref[...], preferred_element_type=jnp.float32) + b1_ref[...])

    # Layer 2 (+ folded sigmoid): bf16 operands again (t1 is in [-1, 1], bf16 is plenty).
    t2 = jnp.tanh(jnp.dot(t1.astype(jnp.bfloat16), w2_ref[...],
                          preferred_element_type=jnp.float32) + b2_ref[...])    # [tb, 32]

    # Layer 3 (out_features == 1): transpose to [32, tb] on the XLU (free slot here) so the
    # per-row scalar lands lane-dense, then VPU scale + sublane reduce -> unmasked [1, tb] store.
    # TODO(synk): optionally switch t1/t2 to bf16 on v6e/v7x (native bf16 VPU/EUP) for ~2x EUP.
    t2t = t2.T                                                                  # [32, tb]
    out_row = jnp.sum(t2t * w3_ref[...], axis=0, keepdims=True) + b3_ref[0, 0]  # [1, tb]
    o_ref[...] = out_row.astype(o_ref.dtype)


def value_network_forward(obv, params, *, tb=8192):
    """obv: [B, obv_dim] float ; params: dict of (w1,b1,w2,b2,w3,b3). Returns [B, 1] f32."""
    B, D = obv.shape

    # --- tile-size selection --------------------------------------------------------------
    # VMEM per tile ~= input double buffer (2*tb*D*4B) + f32 intermediates (~tb*300*4B).
    # Budget 14 MiB so v5e's 16 MiB scoped default is respected without setting
    # vmem_limit_bytes; v6e/v7x have at least 32 MiB scoped so this is always safe.
    bytes_per_row = (2 * D + 300) * 4
    tb = min(tb, (14 * 1024 * 1024) // bytes_per_row)
    tb = max(128, (tb // 128) * 128)

    if B <= tb:
        # Single tile: blocks equal the full array dims, only pad batch up to a sublane multiple.
        num_tiles = 1
        tb = max(8, ((B + 7) // 8) * 8)
    else:
        # Multi tile: tb must be a 128-multiple so the lane-dense (1, tb) output block is legal.
        num_tiles = pl.cdiv(B, tb)
        tb = ((pl.cdiv(B, num_tiles) + 127) // 128) * 128
    b_pad = num_tiles * tb

    x = obv.astype(jnp.float32)                       # streamed as f32 (no bf16 HBM round-trip)
    if b_pad != B:
        x = jnp.pad(x, ((0, b_pad - B), (0, 0)))      # padded rows are sliced off after the call

    # --- fold sigmoid(z) = 0.5*tanh(z/2) + 0.5 into the weights (exact) --------------------
    w1 = params["w1"].astype(jnp.float32)
    b1 = params["b1"].reshape(1, -1).astype(jnp.float32)
    w2 = params["w2"].astype(jnp.float32)
    b2 = params["b2"].reshape(1, -1).astype(jnp.float32)
    w3 = params["w3"].reshape(-1, 1).astype(jnp.float32)
    b3 = params["b3"].reshape(1, 1).astype(jnp.float32)

    w1f = (0.5 * w1).astype(jnp.bfloat16)                        # [D, 64]
    b1f = 0.5 * b1                                               # [1, 64]
    w2f = (0.25 * w2).astype(jnp.bfloat16)                       # [64, 32]
    b2f = 0.5 * b2 + 0.25 * jnp.sum(w2, axis=0, keepdims=True)   # [1, 32]
    w3f = 0.5 * w3                                               # [32, 1]
    b3f = b3 + 0.5 * jnp.sum(w3)                                 # (1, 1) scalar -> SMEM

    def const_spec(shape):
        # Grid-invariant block -> weight stays VMEM-resident across batch tiles.
        # (pipeline_mode=pl.Buffered(1) would additionally drop the unused second buffer.)
        return pl.BlockSpec(shape, lambda i: (0, 0))

    out = pl.pallas_call(
        value_network_kernel,
        out_shape=jax.ShapeDtypeStruct((1, b_pad), jnp.float32),
        grid=(num_tiles,),
        in_specs=[
            pl.BlockSpec((tb, D), lambda i: (i, 0)),              # obv: streamed / double-buffered
            const_spec(w1f.shape),
            const_spec(b1f.shape),
            const_spec(w2f.shape),
            const_spec(b2f.shape),
            const_spec(w3f.shape),
            pl.BlockSpec(memory_space=pltpu.MemorySpace.SMEM),    # folded b3 scalar
        ],
        out_specs=pl.BlockSpec((1, tb), lambda i: (0, i)),        # lane-dense output row
        compiler_params=pltpu.CompilerParams(
            dimension_semantics=("parallel",),                    # megacore split on v7x
        ),
    )(x, w1f, b1f, w2f, b2f, w3f, b3f)

    return out.reshape(b_pad, 1)[:B]


def init_params(key, obv_dim):
    """Deterministic synthetic init (shapes match the nn.Linear layers of ValueNetwork)."""
    k1, k2, k3, k4, k5, k6 = jax.random.split(key, 6)

    def uniform(k, shape, fan_in):
        bound = 1.0 / jnp.sqrt(fan_in)
        return jax.random.uniform(k, shape, jnp.float32, -bound, bound)

    return {
        # stored [in, out] (transposed relative to PyTorch's [out, in])
        "w1": uniform(k1, (obv_dim, 64), obv_dim),
        "b1": uniform(k2, (1, 64), obv_dim),
        "w2": uniform(k3, (64, 32), 64),
        "b2": uniform(k4, (1, 32), 64),
        "w3": uniform(k5, (32, 1), 32),
        "b3": uniform(k6, (1, 1), 32),
    }


def value_network_ref(obv, params):
    h1 = jax.nn.sigmoid(obv @ params["w1"] + params["b1"])
    h2 = jax.nn.sigmoid(h1 @ params["w2"] + params["b2"])
    return h2 @ params["w3"] + params["b3"]


if __name__ == "__main__":
    key = jax.random.PRNGKey(0)
    k_obs, k_par, k_big = jax.random.split(key, 3)

    batch, obv_dim = 8, 16
    obv = jax.random.normal(k_obs, (batch, obv_dim), jnp.float32)
    params = init_params(k_par, obv_dim)

    out = jax.block_until_ready(value_network_forward(obv, params))
    ref = value_network_ref(obv, params)
    assert out.shape == (batch, 1)
    # bf16 matmul operands => compare at bf16 tolerance (measured error is a few 1e-3).
    assert jnp.allclose(out, ref, atol=3e-2, rtol=3e-2)

    # Exercise padding + the multi-tile lane-dense output path with a small forced tile.
    big_b = 2000
    obv_big = jax.random.normal(k_big, (big_b, obv_dim), jnp.float32)
    ref_big = value_network_ref(obv_big, params)

    out_tiled = jax.block_until_ready(value_network_forward(obv_big, params, tb=512))
    assert out_tiled.shape == (big_b, 1)
    assert jnp.allclose(out_tiled, ref_big, atol=3e-2, rtol=3e-2)

    # Default large-tile path (single tile here since big_b < 8192).
    out_big = jax.block_until_ready(value_network_forward(obv_big, params))
    assert out_big.shape == (big_b, 1)
    assert jnp.allclose(out_big, ref_big, atol=3e-2, rtol=3e-2)

    print("KERNEL_OK")
</pallas_src>

<mosaic_0001>
module attributes {stable_mosaic.version = 11 : i64} {
  func.func @value_network_kernel(%arg0: i32, %arg1: memref<8x16xf32, #tpu.memory_space<vmem>>, %arg2: memref<16x64xbf16, #tpu.memory_space<vmem>>, %arg3: memref<1x64xf32, #tpu.memory_space<vmem>>, %arg4: memref<64x32xbf16, #tpu.memory_space<vmem>>, %arg5: memref<1x32xf32, #tpu.memory_space<vmem>>, %arg6: memref<32x1xf32, #tpu.memory_space<vmem>>, %arg7: memref<1x1xf32, #tpu.memory_space<smem>>, %arg8: memref<1x8xf32, #tpu.memory_space<vmem>>) attributes {dimension_semantics = [#tpu.dimension_semantics<parallel>], iteration_bounds = array<i64: 1>, scalar_prefetch = 0 : i64, scratch_operands = 0 : i64, tpu.core_type = #tpu.core_type<tc>, window_params = [{transform_indices = @transform_0, window_bounds = array<i64: 8, 16>}, {pipeline_mode = #tpu.pipeline_mode<synchronous>, transform_indices = @transform_1, window_bounds = array<i64: 16, 64>}, {pipeline_mode = #tpu.pipeline_mode<synchronous>, transform_indices = @transform_2, window_bounds = array<i64: 1, 64>}, {pipeline_mode = #tpu.pipeline_mode<synchronous>, transform_indices = @transform_3, window_bounds = array<i64: 64, 32>}, {pipeline_mode = #tpu.pipeline_mode<synchronous>, transform_indices = @transform_4, window_bounds = array<i64: 1, 32>}, {pipeline_mode = #tpu.pipeline_mode<synchronous>, transform_indices = @transform_5, window_bounds = array<i64: 32, 1>}, {transform_indices = @transform_6, window_bounds = array<i64: 1, 1>}, {transform_indices = @transform_7, window_bounds = array<i64: 1, 8>}]} {
    %c0 = arith.constant 0 : index
    %c0_0 = arith.constant 0 : index
    %0 = vector.load %arg1[%c0, %c0_0] : memref<8x16xf32, #tpu.memory_space<vmem>>, vector<8x16xf32>
    %1 = arith.truncf %0 : vector<8x16xf32> to vector<8x16xbf16>
    %c0_1 = arith.constant 0 : index
    %c0_2 = arith.constant 0 : index
    %2 = vector.load %arg2[%c0_1, %c0_2] : memref<16x64xbf16, #tpu.memory_space<vmem>>, vector<16x64xbf16>
    %cst = arith.constant dense<0.000000e+00> : vector<8x64xf32>
    %3 = tpu.matmul %1, %2, %cst {dimension_numbers = #tpu.dot_dimension_numbers<[1], [0], [0], [1], [0, 0, 1, 1], [], []>} : vector<8x16xbf16>, vector<16x64xbf16>, vector<8x64xf32> -> vector<8x64xf32>
    %c0_3 = arith.constant 0 : index
    %c0_4 = arith.constant 0 : index
    %4 = vector.load %arg3[%c0_3, %c0_4] : memref<1x64xf32, #tpu.memory_space<vmem>>, vector<1x64xf32>
    %5 = vector.broadcast %4 : vector<1x64xf32> to vector<8x64xf32>
    %6 = arith.addf %3, %5 : vector<8x64xf32>
    %7 = math.tanh %6 : vector<8x64xf32>
    %8 = arith.truncf %7 : vector<8x64xf32> to vector<8x64xbf16>
    %c0_5 = arith.constant 0 : index
    %c0_6 = arith.constant 0 : index
    %9 = vector.load %arg4[%c0_5, %c0_6] : memref<64x32xbf16, #tpu.memory_space<vmem>>, vector<64x32xbf16>
    %cst_7 = arith.constant dense<0.000000e+00> : vector<8x32xf32>
    %10 = tpu.matmul %8, %9, %cst_7 {dimension_numbers = #tpu.dot_dimension_numbers<[1], [0], [0], [1], [0, 0, 1, 1], [], []>} : vector<8x64xbf16>, vector<64x32xbf16>, vector<8x32xf32> -> vector<8x32xf32>
    %c0_8 = arith.constant 0 : index
    %c0_9 = arith.constant 0 : index
    %11 = vector.load %arg5[%c0_8, %c0_9] : memref<1x32xf32, #tpu.memory_space<vmem>>, vector<1x32xf32>
    %12 = vector.broadcast %11 : vector<1x32xf32> to vector<8x32xf32>
    %13 = arith.addf %10, %12 : vector<8x32xf32>
    %14 = math.tanh %13 : vector<8x32xf32>
    %15 = tpu.transpose %14, [1, 0] : vector<8x32xf32> -> vector<32x8xf32>
    %c0_10 = arith.constant 0 : index
    %c0_11 = arith.constant 0 : index
    %16 = vector.load %arg6[%c0_10, %c0_11] : memref<32x1xf32, #tpu.memory_space<vmem>>, vector<32x1xf32>
    %17 = vector.broadcast %16 : vector<32x1xf32> to vector<32x8xf32>
    %18 = arith.mulf %15, %17 : vector<32x8xf32>
    %cst_12 = arith.constant dense<0.000000e+00> : vector<8xf32>
    %19 = vector.multi_reduction <add>, %18, %cst_12 [0] : vector<32x8xf32> to vector<8xf32>
    %20 = vector.shape_cast %19 : vector<8xf32> to vector<1x8xf32>
    %c0_13 = arith.constant 0 : index
    %c0_14 = arith.constant 0 : index
    %21 = memref.load %arg7[%c0_13, %c0_14] : memref<1x1xf32, #tpu.memory_space<smem>>
    %22 = vector.broadcast %21 : f32 to vector<1x8xf32>
    %23 = arith.addf %20, %22 : vector<1x8xf32>
    %c0_15 = arith.constant 0 : index
    %c0_16 = arith.constant 0 : index
    %24 = vector.load %arg8[%c0_15, %c0_16] : memref<1x8xf32, #tpu.memory_space<vmem>>, vector<1x8xf32>
    tpu.vector_store %arg8[%c0_15, %c0_16], %23 {strides = array<i32>} : memref<1x8xf32, #tpu.memory_space<vmem>>, vector<1x8xf32>,
    return
  }
  func.func @transform_0(%arg0: i32) -> (i32, i32) {
    %c0_i32 = arith.constant 0 : i32
    %c0_i32_0 = arith.constant 0 : i32
    return %arg0, %c0_i32 : i32, i32
  }
  func.func @transform_1(%arg0: i32) -> (i32, i32) {
    %c0_i32 = arith.constant 0 : i32
    %c0_i32_0 = arith.constant 0 : i32
    %c0_i32_1 = arith.constant 0 : i32
    return %c0_i32, %c0_i32_0 : i32, i32
  }
  func.func @transform_2(%arg0: i32) -> (i32, i32) {
    %c0_i32 = arith.constant 0 : i32
    %c0_i32_0 = arith.constant 0 : i32
    %c0_i32_1 = arith.constant 0 : i32
    return %c0_i32, %c0_i32_0 : i32, i32
  }
  func.func @transform_3(%arg0: i32) -> (i32, i32) {
    %c0_i32 = arith.constant 0 : i32
    %c0_i32_0 = arith.constant 0 : i32
    %c0_i32_1 = arith.constant 0 : i32
    return %c0_i32, %c0_i32_0 : i32, i32
  }
  func.func @transform_4(%arg0: i32) -> (i32, i32) {
    %c0_i32 = arith.constant 0 : i32
    %c0_i32_0 = arith.constant 0 : i32
    %c0_i32_1 = arith.constant 0 : i32
    return %c0_i32, %c0_i32_0 : i32, i32
  }
  func.func @transform_5(%arg0: i32) -> (i32, i32) {
    %c0_i32 = arith.constant 0 : i32
    %c0_i32_0 = arith.constant 0 : i32
    %c0_i32_1 = arith.constant 0 : i32
    return %c0_i32, %c0_i32_0 : i32, i32
  }
  func.func @transform_6(%arg0: i32) -> (i32, i32) {
    %c0_i32 = arith.constant 0 : i32
    %c0_i32_0 = arith.constant 0 : i32
    %c0_i32_1 = arith.constant 0 : i32
    return %c0_i32, %c0_i32_0 : i32, i32
  }
  func.func @transform_7(%arg0: i32) -> (i32, i32) {
    %c0_i32 = arith.constant 0 : i32
    %c0_i32_0 = arith.constant 0 : i32
    return %c0_i32, %arg0 : i32, i32
  }
}

</mosaic_0001>

<llo_original>
// kernel: tpu_custom_call.1
$region0: #{tpu_custom_call.1}
  #allocation0 [shape = 'u32[]', space=smem, size = 0x4, offset = 0x4, fixed_abs, tag = 'smem constant byte address 0x4 - core index']
  #allocation1 [shape = 'u32[144,128]{1,0:T(1,128)}', space=vmem, size = 0x12000, scoped, tag = 'internal scratch']
  #allocation2 [shape = 'f32[1,1]{1,0:T(1,128)S(6)}', space=smem, size = 0x200, scoped, tag = 'scoped memory for tpu_custom_call.1']
  %s0 = inlined_call_operand.vmem [shape: f32[8,16], index: 0, kind: input, shape index: {}]
  %s1 = inlined_call_operand.vmem [shape: bf16[16,64], index: 1, kind: input, shape index: {}]
  %s2 = inlined_call_operand.vmem [shape: f32[1,64], index: 2, kind: input, shape index: {}]
  %s3 = inlined_call_operand.vmem [shape: bf16[64,32], index: 3, kind: input, shape index: {}]
  %s4 = inlined_call_operand.vmem [shape: f32[1,32], index: 4, kind: input, shape index: {}]
  %s5 = inlined_call_operand.vmem [shape: f32[32,1], index: 5, kind: input, shape index: {}]
  %s6 = inlined_call_operand.<no memory space> [shape: f32[1,1], index: 6, kind: input, shape index: {}]
  %s7 = inlined_call_operand.hbm [shape: f32[1,8], index: 7, kind: output, shape index: {}]
  %s8 = sld [smem:[#allocation0]]
  $region38: #{tpu_custom_call.1} parent=0
    _
  %s10 = ssub.s32 1, %s8
  %s11 = scalar_select 0, %s10, %s8
  %12 = sst [smem:[#allocation2]] %s6
  $region1: #{tpu_custom_call.1} parent=0
    #allocation3 [shape = 'u8[512]{0}', space=vmem, size = 0x400, scoped, tag = 'output window, operand 0, single buffered']
    #allocation4 [shape = 's32[1]{0}', space=sflag, size = 0x4, scoped, tag = 'scoped memory for tpu_custom_call.1']
    %13 = vsyncpa [#allocation4], 0
    // Predicated region
    $region2: #{tpu_custom_call.1} parent=1 // pred_check
      _
    $region3: #{tpu_custom_call.1} parent=1 // pred_check_branch
      %15 = sbr.rel (0) target = $region5
    $region4: #{tpu_custom_call.1} parent=1 // pred_region
      _
    $region5: #{tpu_custom_call.1} parent=1 // pred_fallthru
      _
    // Predicated region
    $region6: #{tpu_custom_call.1} parent=1 // pred_check
      _
    $region7: #{tpu_custom_call.1} parent=1 // pred_check_branch
      %17 = sbr.rel (0) target = $region9
    $region8: #{tpu_custom_call.1} parent=1 // pred_region
      _
    $region9: #{tpu_custom_call.1} parent=1 // pred_fallthru
      _
    // Predicated region
    $region10: #{tpu_custom_call.1} parent=1 // pred_check
      _
    $region11: #{tpu_custom_call.1} parent=1 // pred_check_branch
      %19 = sbr.rel (0) target = $region13
    $region12: #{tpu_custom_call.1} parent=1 // pred_region
      _
    $region13: #{tpu_custom_call.1} parent=1 // pred_fallthru
      _
    // Predicated region
    $region14: #{tpu_custom_call.1} parent=1 // pred_check
      _
    $region15: #{tpu_custom_call.1} parent=1 // pred_check_branch
      %21 = sbr.rel (0) target = $region17
    $region16: #{tpu_custom_call.1} parent=1 // pred_region
      _
    $region17: #{tpu_custom_call.1} parent=1 // pred_fallthru
      _
    // Predicated region
    $region18: #{tpu_custom_call.1} parent=1 // pred_check
      _
    $region19: #{tpu_custom_call.1} parent=1 // pred_check_branch
      %23 = sbr.rel (0) target = $region21
    $region20: #{tpu_custom_call.1} parent=1 // pred_region
      _
    $region21: #{tpu_custom_call.1} parent=1 // pred_fallthru
      _
    // Predicated region
    $region22: #{tpu_custom_call.1} parent=1 // pred_check
      _
    $region23: #{tpu_custom_call.1} parent=1 // pred_check_branch
      %25 = sbr.rel (0) target = $region25
    $region24: #{tpu_custom_call.1} parent=1 // pred_region
      _
    $region25: #{tpu_custom_call.1} parent=1 // pred_fallthru
      _
    // Predicated region
    $region26: #{tpu_custom_call.1} parent=1 // pred_check
      _
    $region27: #{tpu_custom_call.1} parent=1 // pred_check_branch
      %27 = sbr.rel (0) target = $region29
    $region28: #{tpu_custom_call.1} parent=1 // pred_region
      _
    $region29: #{tpu_custom_call.1} parent=1 // pred_fallthru
      _
    %v29 = vld [vmem:[%s0] sm:$0xff]
    %v30 = vpack.c.bf16 %v29, %v29
    %v31 = vld [vmem:[%s1] sm:$0xf]
    %v32 = vld [vmem:[%s1 + $0x4] sm:$0xf]
    %v33 = vld [vmem:[%s2] sm:$0x1]
    %v35 = vlaneseq
    %v36 = vshrl.u32 %v35, 7
    %v37 = vsub.s32 0, %v36
    %v38 = vrot.slane %v33, %v37
    %v42 = vunpack.c.l.b16 %v31
    %v43 = vunpack.c.l.b16 %v32
    %v44 = vpack.c.b16 %v43, %v42
    %vm46 = vcmask 130048
    %v48 = vsel %vm46, %v30, 0
    %50 = vmatprep.subr.bf16.mxu0 0
    %51 = vmatpush1.bf16.msra.mxu0 %v44
    %52 = vmatprep.subr.bf16.mxu0 0
    %53 = vmatpush1.bf16.msra.mxu0 0
    %54 = vmatprep.subr.bf16.mxu0 0
    %55 = vmatpush1.bf16.msra.mxu0 0
    %56 = vmatprep.subr.bf16.mxu0 0
    %57 = vmatpush1.bf16.msra.mxu0 0
    %58 = vmatprep.subr.bf16.mxu0 0
    %59 = vmatpush1.bf16.msra.mxu0 0
    %60 = vmatprep.subr.bf16.mxu0 0
    %61 = vmatpush1.bf16.msra.mxu0 0
    %62 = vmatprep.subr.bf16.mxu0 0
    %63 = vmatpush1.bf16.msra.mxu0 0
    %64 = vmatprep.subr.bf16.mxu0 0
    %65 = vmatpush1.bf16.msra.mxu0 0
    %66 = vmatprep.subr.bf16.mxu0 0
    %67 = vmatpush1.bf16.msra.mxu0 0
    %68 = vmatprep.subr.bf16.mxu0 0
    %69 = vmatpush1.bf16.msra.mxu0 0
    %70 = vmatprep.subr.bf16.mxu0 0
    %71 = vmatpush1.bf16.msra.mxu0 0
    %72 = vmatprep.subr.bf16.mxu0 0
    %73 = vmatpush1.bf16.msra.mxu0 0
    %74 = vmatprep.subr.bf16.mxu0 0
    %75 = vmatpush1.bf16.msra.mxu0 0
    %76 = vmatprep.subr.bf16.mxu0 0
    %77 = vmatpush1.bf16.msra.mxu0 0
    %78 = vmatprep.subr.bf16.mxu0 0
    %79 = vmatpush1.bf16.msra.mxu0 0
    %80 = vmatprep.subr.bf16.mxu0 0
    %81 = vmatpush1.bf16.msra.mxu0 0
    %82 = vmatprep.mubr.bf16.mxu0 0
    %83 = vmatmul.mubr.bf16.gmra.mrb[0].mxu0 %v48
    %v84 = vpop.f32.mrb[0].mxu0
    %v85 = vadd.f32 %v38, %v84
    %v86 = vpop.f32.mrb[0].mxu0
    %v87 = vpop.f32.mrb[0].mxu0
    %v88 = vpop.f32.mrb[0].mxu0
    %89 = vdwg.mxu0
    %v90 = vtanh.pop %v85
    %v91 = vpack.c.bf16 %v90, %v90
    %v92 = vld [vmem:[%s3] sm:$0xf]
    %v93 = vld [vmem:[%s3 + $0x4] sm:$0xf]
    %v94 = vld [vmem:[%s3 + $0x8] sm:$0xf]
    %v95 = vld [vmem:[%s3 + $0xc] sm:$0xf]
    %v96 = vld [vmem:[%s3 + $0x10] sm:$0xf]
    %v97 = vld [vmem:[%s3 + $0x14] sm:$0xf]
    %v98 = vld [vmem:[%s3 + $0x18] sm:$0xf]
    %v99 = vld [vmem:[%s3 + $0x1c] sm:$0xf]
    %v100 = vld [vmem:[%s4] sm:$0x1]
    %v102 = vlaneseq
    %v103 = vshrl.u32 %v102, 7
    %v104 = vsub.s32 0, %v103
    %v105 = vrot.slane %v100, %v104
    %v115 = vunpack.c.l.b16 %v92
    %v116 = vunpack.c.l.b16 %v93
    %v117 = vunpack.c.l.b16 %v94
    %v118 = vunpack.c.l.b16 %v95
    %v119 = vunpack.c.l.b16 %v96
    %v120 = vunpack.c.l.b16 %v97
    %v121 = vunpack.c.l.b16 %v98
    %v122 = vunpack.c.l.b16 %v99
    %v123 = vpack.c.b16 %v116, %v115
    %v124 = vpack.c.b16 %v118, %v117
    %v125 = vpack.c.b16 %v120, %v119
    %v126 = vpack.c.b16 %v122, %v121
    %vm131 = vcmask 523264
    %v133 = vsel %vm131, %v91, 0
    %135 = vmatprep.subr.bf16.mxu0 0
    %136 = vmatpush1.bf16.msra.mxu0 %v123
    %137 = vmatprep.subr.bf16.mxu0 0
    %138 = vmatpush1.bf16.msra.mxu0 %v124
    %139 = vmatprep.subr.bf16.mxu0 0
    %140 = vmatpush1.bf16.msra.mxu0 %v125
    %141 = vmatprep.subr.bf16.mxu0 0
    %142 = vmatpush1.bf16.msra.mxu0 %v126
    %143 = vmatprep.subr.bf16.mxu0 0
    %144 = vmatpush1.bf16.msra.mxu0 0
    %145 = vmatprep.subr.bf16.mxu0 0
    %146 = vmatpush1.bf16.msra.mxu0 0
    %147 = vmatprep.subr.bf16.mxu0 0
    %148 = vmatpush1.bf16.msra.mxu0 0
    %149 = vmatprep.subr.bf16.mxu0 0
    %150 = vmatpush1.bf16.msra.mxu0 0
    %151 = vmatprep.subr.bf16.mxu0 0
    %152 = vmatpush1.bf16.msra.mxu0 0
    %153 = vmatprep.subr.bf16.mxu0 0
    %154 = vmatpush1.bf16.msra.mxu0 0
    %155 = vmatprep.subr.bf16.mxu0 0
    %156 = vmatpush1.bf16.msra.mxu0 0
    %157 = vmatprep.subr.bf16.mxu0 0
    %158 = vmatpush1.bf16.msra.mxu0 0
    %159 = vmatprep.subr.bf16.mxu0 0
    %160 = vmatpush1.bf16.msra.mxu0 0
    %161 = vmatprep.subr.bf16.mxu0 0
    %162 = vmatpush1.bf16.msra.mxu0 0
    %163 = vmatprep.subr.bf16.mxu0 0
    %164 = vmatpush1.bf16.msra.mxu0 0
    %165 = vmatprep.subr.bf16.mxu0 0
    %166 = vmatpush1.bf16.msra.mxu0 0
    %167 = vmatprep.mubr.bf16.mxu0 0
    %168 = vmatmul.mubr.bf16.gmra.mrb[0].mxu0 %v133
    %v169 = vpop.f32.mrb[0].mxu0
    %v170 = vadd.f32 %v105, %v169
    %v171 = vpop.f32.mrb[0].mxu0
    %v172 = vpop.f32.mrb[0].mxu0
    %v173 = vpop.f32.mrb[0].mxu0
    %174 = vdwg.mxu0
    %v175 = vtanh.pop %v170
    %176 = vxpose.xlu0.b32.start [1/16] %v175, 128
    %177 = vxpose.xlu0.b32.cont [2/16] 0.0, 128
    %178 = vxpose.xlu0.b32.cont [3/16] 0.0, 128
    %179 = vxpose.xlu0.b32.cont [4/16] 0.0, 128
    %180 = vxpose.xlu0.b32.cont [5/16] 0.0, 128
    %181 = vxpose.xlu0.b32.cont [6/16] 0.0, 128
    %182 = vxpose.xlu0.b32.cont [7/16] 0.0, 128
    %183 = vxpose.xlu0.b32.cont [8/16] 0.0, 128
    %184 = vxpose.xlu0.b32.cont [9/16] 0.0, 128
    %185 = vxpose.xlu0.b32.cont [10/16] 0.0, 128
    %186 = vxpose.xlu0.b32.cont [11/16] 0.0, 128
    %187 = vxpose.xlu0.b32.cont [12/16] 0.0, 128
    %188 = vxpose.xlu0.b32.cont [13/16] 0.0, 128
    %189 = vxpose.xlu0.b32.cont [14/16] 0.0, 128
    %190 = vxpose.xlu0.b32.cont [15/16] 0.0, 128
    %191 = vxpose.xlu0.b32.end [16/16] 0.0, 128
    %v192 = vpop.trf.xlu0
    %v193 = vpop.trf.xlu0
    %v194 = vpop.trf.xlu0
    %v195 = vpop.trf.xlu0
    %v196 = vpop.trf.xlu0
    %v197 = vpop.trf.xlu0
    %v198 = vpop.trf.xlu0
    %v199 = vpop.trf.xlu0
    %v200 = vpop.trf.xlu0
    %v201 = vpop.trf.xlu0
    %v202 = vpop.trf.xlu0
    %v203 = vpop.trf.xlu0
    %v204 = vpop.trf.xlu0
    %v205 = vpop.trf.xlu0
    %v206 = vpop.trf.xlu0
    %v207 = vpop.trf.xlu0
    %v208 = vld [vmem:[%s5] sm:$0xff]
    %v209 = vld [vmem:[%s5 + $0x8] sm:$0xff]
    %v210 = vld [vmem:[%s5 + $0x10] sm:$0xff]
    %v211 = vld [vmem:[%s5 + $0x18] sm:$0xff]
    %213 = vset.pattern.permute.xlu0 0
    %214 = vperm.xlu0 %213, %v208
    %v215 = vpop.permute.xlu0 %214
    %218 = vset.pattern.permute.xlu0 0
    %219 = vperm.xlu0 %218, %v209
    %v220 = vpop.permute.xlu0 %219
    %223 = vset.pattern.permute.xlu0 0
    %224 = vperm.xlu0 %223, %v210
    %v225 = vpop.permute.xlu0 %224
    %228 = vset.pattern.permute.xlu0 0
    %229 = vperm.xlu0 %228, %v211
    %v230 = vpop.permute.xlu0 %229
    %v232 = vmul.f32 %v192, %v215
    %v233 = vmul.f32 %v193, %v220
    %v234 = vmul.f32 %v194, %v225
    %v235 = vmul.f32 %v195, %v230
    %vm236 = vcmask 64512
    %v237 = vsel %vm236, %v232, 0.0
    %v238 = vsel %vm236, %v233, 0.0
    %v239 = vadd.f32 %v237, %v238
    %v240 = vsel %vm236, %v234, 0.0
    %v241 = vadd.f32 %v239, %v240
    %v242 = vsel %vm236, %v235, 0.0
    %v243 = vadd.f32 %v241, %v242
    %v244 = vrot.slane %v243, 4
    %v245 = vadd.f32 %v243, %v244
    %v246 = vrot.slane %v245, 2
    %v247 = vadd.f32 %v245, %v246
    %v248 = vrot.slane %v247, 1
    %v249 = vadd.f32 %v247, %v248
    %s250 = sld [smem:[#allocation2]]
    %v251 = vstv %s250
    %v252 = vadd.f32 %v249, %v251
    %vm253 = vcmask 57344
    %254 = vst.msk [vmem:[#allocation3] sm:$0x1] %vm253, %v252
    // Predicated region
    $region30: #{tpu_custom_call.1} parent=1 // pred_check
      _
    $region31: #{tpu_custom_call.1} parent=1 // pred_check_branch
      %256 = sbr.rel (0) target = $region33
    $region32: #{tpu_custom_call.1} parent=1 // pred_region
      %s258 = ssub.s32 16, 16
      %259 = vsyncadd [#allocation4], %s258
      %s261 = sshll.u32 [#allocation3], 4
      %s262 = int_to_ptr.vmem [resolvable:$true] %s261
      %264 = dma.vmem_to_hbm [thread:$0]  %s262, 16, %s7, [#allocation4]
    $region33: #{tpu_custom_call.1} parent=1 // pred_fallthru
      _
    // Predicated region
    $region34: #{tpu_custom_call.1} parent=1 // pred_check
      _
    $region35: #{tpu_custom_call.1} parent=1 // pred_check_branch
      %266 = sbr.rel (0) target = $region37
    $region36: #{tpu_custom_call.1} parent=1 // pred_region
      %267 = dma.done [#allocation4], 16
    $region37: #{tpu_custom_call.1} parent=1 // pred_fallthru
      _
    %268 = vsyncpa [#allocation4], 1

</llo_original>
